<compile_context>
chip_gen: v6e
topology: v6e:2x2x1
jax: 0.10.0
libtpu: 0.0.40
codegen_flags: <defaults>
</compile_context>

<pallas_src>
import functools

import jax
import jax.numpy as jnp
from jax.experimental import pallas as pl
from jax.experimental.pallas import tpu as pltpu


def _generator_moon_kernel(z_ref, lbl_ref, w1z_ref, mcat_ref, w2_ref, w3_ref,
                           out_ref, *, n_classes):
    """One batch tile.  Activations are feature-major: (features, TB).

    z_ref    : (TB, z_dim)           input dtype (cast in-kernel)
    lbl_ref  : (2, TB)               int32   [row 0 = label1, row 1 = label2]
    w1z_ref  : (4H, z_dim)           compute dtype  (input_fc weight, z cols)
    mcat_ref : (4H, K_emb)           f32     ([W1a@emb^T | W1b@emb^T], padded)
    w2_ref   : (2H, 4H)              compute dtype  (hidden_fc weight)
    w3_ref   : (2H, 1)               f32     (output_fc weight as a column)
    out_ref  : (1, TB)               f32
    """
    cdt = w1z_ref.dtype
    tb = z_ref.shape[0]

    # ---- input_fc, z part: trans_b contraction on the MXU -> (4H, TB) -------
    h = jax.lax.dot_general(
        w1z_ref[...], z_ref[...].astype(cdt),
        dimension_numbers=(((1,), (1,)), ((), ())),
        preferred_element_type=jnp.float32)

    # ---- input_fc, folded embeddings: one-hot (VPU) + one MXU matmul --------
    k_emb = mcat_ref.shape[1]                               # padded 2*n_classes
    lbl = lbl_ref[...]                                      # (2, TB) int32
    row = jax.lax.broadcasted_iota(jnp.int32, (k_emb, tb), 0)
    tgt = jnp.where(row < n_classes, lbl[0:1, :], lbl[1:2, :] + n_classes)
    onehot = (row == tgt).astype(jnp.float32)               # (K_emb, TB)
    h = h + jnp.dot(mcat_ref[...], onehot, preferred_element_type=jnp.float32)

    # ---- ReLU fused with the cast to the next matmul's operand dtype --------
    h = jnp.maximum(h, 0.0).astype(w2_ref.dtype)

    # ---- hidden_fc + ReLU (MXU, f32 accumulation) ----------------------------
    h2 = jnp.dot(w2_ref[...], h, preferred_element_type=jnp.float32)
    h2 = jnp.maximum(h2, 0.0)

    # ---- output_fc (out_features == 1): VPU multiply + sublane reduction -----
    o = jnp.sum(h2 * w3_ref[...], axis=0, keepdims=True)    # (1, TB)

    # ---- Sigmoid via tanh: stays on the EUP, no VALU divide -------------------
    out_ref[...] = 0.5 * (jnp.tanh(0.5 * o) + 1.0)


def _pick_batch_tile(batch, block_b):
    """Large, lane-aligned tiles; >=2 grid steps once batch >= 256 so both v7x
    TensorCores get work (no effect on single-TC v5e/v6e)."""
    if batch < 256:
        return batch                                   # single step, full array
    half = -(-batch // 2)                              # ceil(batch / 2)
    half_aligned = max(128, (half // 128) * 128)       # round down to 128 lanes
    return min(block_b, half_aligned)


def generator_moon_forward(z, label1, label2, params, *,
                           compute_dtype=jnp.bfloat16, block_b=2048):
    """Forward of Generator_moon.

    z         : (B, z_dim) float
    label1/2  : (B,) integer class ids
    params    : PyTorch-layout weights (all Linear layers bias-free):
                  embedding (n_classes, label_dim)
                  w1 (4H, z_dim + 2*label_dim)  -- input_fc.weight
                  w2 (2H, 4H)                   -- hidden_fc.weight
                  w3 (1, 2H)                    -- output_fc.weight
    compute_dtype: matmul-operand dtype.  bf16 (default) uses the v6e/v7x fast
                   MXU path with f32 accumulation; pass jnp.float32 for
                   torch-faithful numerics.
    """
    B, z_dim = z.shape
    emb = params["embedding"].astype(jnp.float32)
    w1 = params["w1"].astype(jnp.float32)
    w2 = params["w2"].astype(jnp.float32)
    w3 = params["w3"].astype(jnp.float32)
    n_classes, label_dim = emb.shape
    hid4, in_ch = w1.shape
    hid2 = w2.shape[0]
    assert in_ch == z_dim + 2 * label_dim

    hi = jax.lax.Precision.HIGHEST
    # Split input_fc's input columns (fuses the concat) and fold the embedding
    # through input_fc once on the host (tiny matmuls, done once).
    w1z = w1[:, :z_dim].astype(compute_dtype)                       # (4H, z_dim)
    m1 = jnp.dot(w1[:, z_dim:z_dim + label_dim], emb.T, precision=hi)
    m2 = jnp.dot(w1[:, z_dim + label_dim:], emb.T, precision=hi)
    m_cat = jnp.concatenate([m1, m2], axis=1)                       # (4H, 2*nc)
    kc = 2 * n_classes
    kc_pad = ((kc + 7) // 8) * 8                                    # sublane pad
    if kc_pad != kc:
        m_cat = jnp.pad(m_cat, ((0, 0), (0, kc_pad - kc)))
    w2_c = w2.astype(compute_dtype)                                 # (2H, 4H)
    w3_col = w3.T                                                   # (2H, 1) f32

    # Pack both label vectors into one (2, B) operand: one DMA per grid step.
    labels = jnp.stack(
        [label1.astype(jnp.int32), label2.astype(jnp.int32)], axis=0)

    tb = _pick_batch_tile(B, block_b)
    grid = (pl.cdiv(B, tb),)

    lane_spec = lambda rows: pl.BlockSpec((rows, tb), lambda i: (0, i))
    resident = lambda shape: pl.BlockSpec(shape, lambda i: (0, 0))

    flops = 2 * B * (hid4 * (z_dim + kc_pad) + hid2 * hid4 + hid2)
    bytes_accessed = int(
        z.size * z.dtype.itemsize + labels.size * 4 + B * 4 +
        w1z.size * w1z.dtype.itemsize + m_cat.size * 4 +
        w2_c.size * w2_c.dtype.itemsize + w3_col.size * 4)
    cost = pl.CostEstimate(flops=flops, transcendentals=B,
                           bytes_accessed=bytes_accessed)

    kernel = functools.partial(_generator_moon_kernel, n_classes=n_classes)

    out = pl.pallas_call(
        kernel,
        out_shape=jax.ShapeDtypeStruct((1, B), jnp.float32),
        grid=grid,
        in_specs=[
            pl.BlockSpec((tb, z_dim), lambda i: (i, 0)),   # z, native layout
            lane_spec(2),                                  # packed labels
            resident((hid4, z_dim)),                       # w1z  (resident)
            resident((hid4, kc_pad)),                      # m_cat
            resident((hid2, hid4)),                        # w2
            resident((hid2, 1)),                           # w3 column
        ],
        out_specs=lane_spec(1),
        compiler_params=pltpu.CompilerParams(
            dimension_semantics=("parallel",),   # megacore-shard the batch axis
            vmem_limit_bytes=48 * 1024 * 1024,
        ),
        cost_estimate=cost,
    )(z, labels, w1z, m_cat, w2_c, w3_col)

    return out.reshape(B, 1)


def _reference_forward(z, label1, label2, params):
    emb = params["embedding"]
    hi = jax.lax.Precision.HIGHEST
    x = jnp.concatenate(
        [z, emb[label1.astype(jnp.int32)], emb[label2.astype(jnp.int32)]],
        axis=1)
    x = jax.nn.relu(jnp.dot(x, params["w1"].T, precision=hi))
    x = jax.nn.relu(jnp.dot(x, params["w2"].T, precision=hi))
    x = jnp.dot(x, params["w3"].T, precision=hi)
    return jax.nn.sigmoid(x)


if __name__ == "__main__":
    # "opt" configuration consistent with the module: moons dataset (2 classes),
    # label_dim=8, teacher.lin.weight.size(1)=4, opt.dim=2, hidden_dim=32.
    n_classes = 2
    label_dim = 8
    teacher_in = 4
    dim = 2
    hidden_dim = 32
    z_dim = teacher_in + 2 * dim                 # 8
    in_channels = z_dim + 2 * label_dim          # 24

    key = jax.random.PRNGKey(0)
    k_emb, k_w1, k_w2, k_w3, k_data = jax.random.split(key, 5)

    params = {
        "embedding": jax.random.normal(k_emb, (n_classes, label_dim), jnp.float32),
        "w1": jax.random.normal(k_w1, (hidden_dim * 4, in_channels), jnp.float32) * 0.1,
        "w2": jax.random.normal(k_w2, (hidden_dim * 2, hidden_dim * 4), jnp.float32) * 0.1,
        "w3": jax.random.normal(k_w3, (1, hidden_dim * 2), jnp.float32) * 0.1,
    }

    def make_inputs(b, k):
        kz, k1, k2 = jax.random.split(k, 3)
        zz = jax.random.normal(kz, (b, z_dim), jnp.float32)
        l1 = jax.random.randint(k1, (b,), 0, n_classes, jnp.int32)
        l2 = jax.random.randint(k2, (b,), 0, n_classes, jnp.int32)
        return zz, l1, l2

    def check(b, k, compute_dtype, tol):
        zz, l1, l2 = make_inputs(b, k)
        ref = _reference_forward(zz, l1, l2, params)
        out = jax.block_until_ready(
            generator_moon_forward(zz, l1, l2, params,
                                   compute_dtype=compute_dtype))
        assert out.shape == (b, 1), out.shape
        err = float(jnp.max(jnp.abs(out - ref)))
        assert err < tol, f"B={b} dtype={compute_dtype}: max abs err = {err}"

    kk = jax.random.split(k_data, 3)
    # Tiny batch, single grid step: f32 (torch-faithful) and bf16 fast paths.
    check(8, kk[0], jnp.float32, 2e-3)
    check(8, kk[1], jnp.bfloat16, 3e-2)
    # Ragged multi-step grid (3 tiles of 128 lanes covering 300 rows) exercises
    # the masked partial-tile path flagged in the review.
    check(300, kk[2], jnp.float32, 2e-3)

    print("KERNEL_OK")
</pallas_src>

<mosaic_0001>
module attributes {stable_mosaic.version = 11 : i64} {
  func.func @_generator_moon_kernel(%arg0: i32, %arg1: memref<8x8xf32, #tpu.memory_space<vmem>>, %arg2: memref<2x8xi32, #tpu.memory_space<vmem>>, %arg3: memref<128x8xf32, #tpu.memory_space<vmem>>, %arg4: memref<128x8xf32, #tpu.memory_space<vmem>>, %arg5: memref<64x128xf32, #tpu.memory_space<vmem>>, %arg6: memref<64x1xf32, #tpu.memory_space<vmem>>, %arg7: memref<1x8xf32, #tpu.memory_space<vmem>>) attributes {dimension_semantics = [#tpu.dimension_semantics<parallel>], iteration_bounds = array<i64: 1>, scalar_prefetch = 0 : i64, scratch_operands = 0 : i64, tpu.core_type = #tpu.core_type<tc>, window_params = [{transform_indices = @transform_0, window_bounds = array<i64: 8, 8>}, {transform_indices = @transform_1, window_bounds = array<i64: 2, 8>}, {pipeline_mode = #tpu.pipeline_mode<synchronous>, transform_indices = @transform_2, window_bounds = array<i64: 128, 8>}, {pipeline_mode = #tpu.pipeline_mode<synchronous>, transform_indices = @transform_3, window_bounds = array<i64: 128, 8>}, {pipeline_mode = #tpu.pipeline_mode<synchronous>, transform_indices = @transform_4, window_bounds = array<i64: 64, 128>}, {pipeline_mode = #tpu.pipeline_mode<synchronous>, transform_indices = @transform_5, window_bounds = array<i64: 64, 1>}, {transform_indices = @transform_6, window_bounds = array<i64: 1, 8>}]} {
    %c0 = arith.constant 0 : index
    %c0_0 = arith.constant 0 : index
    %0 = vector.load %arg3[%c0, %c0_0] : memref<128x8xf32, #tpu.memory_space<vmem>>, vector<128x8xf32>
    %c0_1 = arith.constant 0 : index
    %c0_2 = arith.constant 0 : index
    %1 = vector.load %arg1[%c0_1, %c0_2] : memref<8x8xf32, #tpu.memory_space<vmem>>, vector<8x8xf32>
    %cst = arith.constant dense<0.000000e+00> : vector<128x8xf32>
    %2 = tpu.matmul %0, %1, %cst {dimension_numbers = #tpu.dot_dimension_numbers<[1], [1], [0], [0], [0, 0, 1, 0], [], []>} : vector<128x8xf32>, vector<8x8xf32>, vector<128x8xf32> -> vector<128x8xf32>
    %c0_3 = arith.constant 0 : index
    %c0_4 = arith.constant 0 : index
    %3 = vector.load %arg2[%c0_3, %c0_4] : memref<2x8xi32, #tpu.memory_space<vmem>>, vector<2x8xi32>
    %4 = tpu.iota {dimensions = array<i32: 0>} : vector<8x8xi32>
    %c2_i32 = arith.constant 2 : i32
    %5 = vector.broadcast %c2_i32 : i32 to vector<8x8xi32>
    %6 = arith.cmpi slt, %4, %5 : vector<8x8xi32>
    %7 = vector.extract_strided_slice %3 {offsets = [0, 0], sizes = [1, 8], strides = [1, 1]} : vector<2x8xi32> to vector<1x8xi32>
    %8 = vector.extract_strided_slice %3 {offsets = [1, 0], sizes = [1, 8], strides = [1, 1]} : vector<2x8xi32> to vector<1x8xi32>
    %c2_i32_5 = arith.constant 2 : i32
    %9 = vector.broadcast %c2_i32_5 : i32 to vector<1x8xi32>
    %10 = arith.addi %8, %9 : vector<1x8xi32>
    %11 = vector.shape_cast %7 : vector<1x8xi32> to vector<1x8xi32>
    %12 = vector.broadcast %11 : vector<1x8xi32> to vector<8x8xi32>
    %13 = vector.shape_cast %10 : vector<1x8xi32> to vector<1x8xi32>
    %14 = vector.broadcast %13 : vector<1x8xi32> to vector<8x8xi32>
    %15 = arith.select %6, %12, %14 : vector<8x8xi1>, vector<8x8xi32>
    %16 = arith.cmpi eq, %4, %15 : vector<8x8xi32>
    %17 = arith.extui %16 : vector<8x8xi1> to vector<8x8xi32>
    %18 = arith.sitofp %17 : vector<8x8xi32> to vector<8x8xf32>
    %c0_6 = arith.constant 0 : index
    %c0_7 = arith.constant 0 : index
    %19 = vector.load %arg4[%c0_6, %c0_7] : memref<128x8xf32, #tpu.memory_space<vmem>>, vector<128x8xf32>
    %cst_8 = arith.constant dense<0.000000e+00> : vector<128x8xf32>
    %20 = tpu.matmul %19, %18, %cst_8 {dimension_numbers = #tpu.dot_dimension_numbers<[1], [0], [0], [1], [0, 0, 1, 1], [], []>} : vector<128x8xf32>, vector<8x8xf32>, vector<128x8xf32> -> vector<128x8xf32>
    %21 = arith.addf %2, %20 : vector<128x8xf32>
    %cst_9 = arith.constant 0.000000e+00 : f32
    %22 = vector.broadcast %cst_9 : f32 to vector<128x8xf32>
    %23 = arith.maximumf %21, %22 : vector<128x8xf32>
    %c0_10 = arith.constant 0 : index
    %c0_11 = arith.constant 0 : index
    %24 = vector.load %arg5[%c0_10, %c0_11] : memref<64x128xf32, #tpu.memory_space<vmem>>, vector<64x128xf32>
    %cst_12 = arith.constant dense<0.000000e+00> : vector<64x8xf32>
    %25 = tpu.matmul %24, %23, %cst_12 {dimension_numbers = #tpu.dot_dimension_numbers<[1], [0], [0], [1], [0, 0, 1, 1], [], []>} : vector<64x128xf32>, vector<128x8xf32>, vector<64x8xf32> -> vector<64x8xf32>
    %cst_13 = arith.constant 0.000000e+00 : f32
    %26 = vector.broadcast %cst_13 : f32 to vector<64x8xf32>
    %27 = arith.maximumf %25, %26 : vector<64x8xf32>
    %c0_14 = arith.constant 0 : index
    %c0_15 = arith.constant 0 : index
    %28 = vector.load %arg6[%c0_14, %c0_15] : memref<64x1xf32, #tpu.memory_space<vmem>>, vector<64x1xf32>
    %29 = vector.broadcast %28 : vector<64x1xf32> to vector<64x8xf32>
    %30 = arith.mulf %27, %29 : vector<64x8xf32>
    %cst_16 = arith.constant dense<0.000000e+00> : vector<8xf32>
    %31 = vector.multi_reduction <add>, %30, %cst_16 [0] : vector<64x8xf32> to vector<8xf32>
    %32 = vector.shape_cast %31 : vector<8xf32> to vector<1x8xf32>
    %cst_17 = arith.constant 5.000000e-01 : f32
    %33 = vector.broadcast %cst_17 : f32 to vector<1x8xf32>
    %34 = arith.mulf %33, %32 : vector<1x8xf32>
    %35 = math.tanh %34 : vector<1x8xf32>
    %cst_18 = arith.constant 1.000000e+00 : f32
    %36 = vector.broadcast %cst_18 : f32 to vector<1x8xf32>
    %37 = arith.addf %35, %36 : vector<1x8xf32>
    %cst_19 = arith.constant 5.000000e-01 : f32
    %38 = vector.broadcast %cst_19 : f32 to vector<1x8xf32>
    %39 = arith.mulf %38, %37 : vector<1x8xf32>
    %c0_20 = arith.constant 0 : index
    %c0_21 = arith.constant 0 : index
    %40 = vector.load %arg7[%c0_20, %c0_21] : memref<1x8xf32, #tpu.memory_space<vmem>>, vector<1x8xf32>
    tpu.vector_store %arg7[%c0_20, %c0_21], %39 {strides = array<i32>} : memref<1x8xf32, #tpu.memory_space<vmem>>, vector<1x8xf32>,
    return
  }
  func.func @transform_0(%arg0: i32) -> (i32, i32) {
    %c0_i32 = arith.constant 0 : i32
    %c0_i32_0 = arith.constant 0 : i32
    return %arg0, %c0_i32 : i32, i32
  }
  func.func @transform_1(%arg0: i32) -> (i32, i32) {
    %c0_i32 = arith.constant 0 : i32
    %c0_i32_0 = arith.constant 0 : i32
    return %c0_i32, %arg0 : i32, i32
  }
  func.func @transform_2(%arg0: i32) -> (i32, i32) {
    %c0_i32 = arith.constant 0 : i32
    %c0_i32_0 = arith.constant 0 : i32
    %c0_i32_1 = arith.constant 0 : i32
    return %c0_i32, %c0_i32_0 : i32, i32
  }
  func.func @transform_3(%arg0: i32) -> (i32, i32) {
    %c0_i32 = arith.constant 0 : i32
    %c0_i32_0 = arith.constant 0 : i32
    %c0_i32_1 = arith.constant 0 : i32
    return %c0_i32, %c0_i32_0 : i32, i32
  }
  func.func @transform_4(%arg0: i32) -> (i32, i32) {
    %c0_i32 = arith.constant 0 : i32
    %c0_i32_0 = arith.constant 0 : i32
    %c0_i32_1 = arith.constant 0 : i32
    return %c0_i32, %c0_i32_0 : i32, i32
  }
  func.func @transform_5(%arg0: i32) -> (i32, i32) {
    %c0_i32 = arith.constant 0 : i32
    %c0_i32_0 = arith.constant 0 : i32
    %c0_i32_1 = arith.constant 0 : i32
    return %c0_i32, %c0_i32_0 : i32, i32
  }
  func.func @transform_6(%arg0: i32) -> (i32, i32) {
    %c0_i32 = arith.constant 0 : i32
    %c0_i32_0 = arith.constant 0 : i32
    return %c0_i32, %arg0 : i32, i32
  }
}

</mosaic_0001>

<llo_original>
// kernel: tpu_custom_call.1
$region0: #{tpu_custom_call.1}
  #allocation0 [shape = 'u32[]', space=smem, size = 0x4, offset = 0x4, fixed_abs, tag = 'smem constant byte address 0x4 - core index']
  #allocation1 [shape = 'u32[144,128]{1,0:T(1,128)}', space=vmem, size = 0x12000, scoped, tag = 'internal scratch']
  %s0 = inlined_call_operand.vmem [shape: f32[8,8], index: 0, kind: input, shape index: {}]
  %s1 = inlined_call_operand.vmem [shape: s32[2,8], index: 1, kind: input, shape index: {}]
  %s2 = inlined_call_operand.vmem [shape: f32[128,8], index: 2, kind: input, shape index: {}]
  %s3 = inlined_call_operand.vmem [shape: f32[128,8], index: 3, kind: input, shape index: {}]
  %s4 = inlined_call_operand.vmem [shape: f32[64,128], index: 4, kind: input, shape index: {}]
  %s5 = inlined_call_operand.vmem [shape: f32[64,1], index: 5, kind: input, shape index: {}]
  %s6 = inlined_call_operand.hbm [shape: f32[1,8], index: 6, kind: output, shape index: {}]
  %s7 = sld [smem:[#allocation0]]
  $region34: #{tpu_custom_call.1} parent=0
    _
  %s9 = ssub.s32 1, %s7
  %s10 = scalar_select 0, %s9, %s7
  $region1: #{tpu_custom_call.1} parent=0
    #allocation2 [shape = 'u8[512]{0}', space=vmem, size = 0x400, scoped, tag = 'output window, operand 0, single buffered']
    #allocation3 [shape = 's32[1]{0}', space=sflag, size = 0x4, scoped, tag = 'scoped memory for tpu_custom_call.1']
    %11 = vsyncpa [#allocation3], 0
    // Predicated region
    $region2: #{tpu_custom_call.1} parent=1 // pred_check
      _
    $region3: #{tpu_custom_call.1} parent=1 // pred_check_branch
      %13 = sbr.rel (0) target = $region5
    $region4: #{tpu_custom_call.1} parent=1 // pred_region
      _
    $region5: #{tpu_custom_call.1} parent=1 // pred_fallthru
      _
    // Predicated region
    $region6: #{tpu_custom_call.1} parent=1 // pred_check
      _
    $region7: #{tpu_custom_call.1} parent=1 // pred_check_branch
      %15 = sbr.rel (0) target = $region9
    $region8: #{tpu_custom_call.1} parent=1 // pred_region
      _
    $region9: #{tpu_custom_call.1} parent=1 // pred_fallthru
      _
    // Predicated region
    $region10: #{tpu_custom_call.1} parent=1 // pred_check
      _
    $region11: #{tpu_custom_call.1} parent=1 // pred_check_branch
      %17 = sbr.rel (0) target = $region13
    $region12: #{tpu_custom_call.1} parent=1 // pred_region
      _
    $region13: #{tpu_custom_call.1} parent=1 // pred_fallthru
      _
    // Predicated region
    $region14: #{tpu_custom_call.1} parent=1 // pred_check
      _
    $region15: #{tpu_custom_call.1} parent=1 // pred_check_branch
      %19 = sbr.rel (0) target = $region17
    $region16: #{tpu_custom_call.1} parent=1 // pred_region
      _
    $region17: #{tpu_custom_call.1} parent=1 // pred_fallthru
      _
    // Predicated region
    $region18: #{tpu_custom_call.1} parent=1 // pred_check
      _
    $region19: #{tpu_custom_call.1} parent=1 // pred_check_branch
      %21 = sbr.rel (0) target = $region21
    $region20: #{tpu_custom_call.1} parent=1 // pred_region
      _
    $region21: #{tpu_custom_call.1} parent=1 // pred_fallthru
      _
    // Predicated region
    $region22: #{tpu_custom_call.1} parent=1 // pred_check
      _
    $region23: #{tpu_custom_call.1} parent=1 // pred_check_branch
      %23 = sbr.rel (0) target = $region25
    $region24: #{tpu_custom_call.1} parent=1 // pred_region
      _
    $region25: #{tpu_custom_call.1} parent=1 // pred_fallthru
      _
    %v24 = vld [vmem:[%s2] sm:$0xff]
    %v25 = vld [vmem:[%s2 + $0x8] sm:$0xff]
    %v26 = vld [vmem:[%s2 + $0x10] sm:$0xff]
    %v27 = vld [vmem:[%s2 + $0x18] sm:$0xff]
    %v28 = vld [vmem:[%s2 + $0x20] sm:$0xff]
    %v29 = vld [vmem:[%s2 + $0x28] sm:$0xff]
    %v30 = vld [vmem:[%s2 + $0x30] sm:$0xff]
    %v31 = vld [vmem:[%s2 + $0x38] sm:$0xff]
    %v32 = vld [vmem:[%s2 + $0x40] sm:$0xff]
    %v33 = vld [vmem:[%s2 + $0x48] sm:$0xff]
    %v34 = vld [vmem:[%s2 + $0x50] sm:$0xff]
    %v35 = vld [vmem:[%s2 + $0x58] sm:$0xff]
    %v36 = vld [vmem:[%s2 + $0x60] sm:$0xff]
    %v37 = vld [vmem:[%s2 + $0x68] sm:$0xff]
    %v38 = vld [vmem:[%s2 + $0x70] sm:$0xff]
    %v39 = vld [vmem:[%s2 + $0x78] sm:$0xff]
    %v40 = vld [vmem:[%s0] sm:$0xff]
    %v41 = vld [vmem:[%s1] sm:$0x3]
    %v42 = vlaneseq
    %v43 = vshrl.u32 %v42, 7
    %vm44 = vcmp.lt.s32.totalorder %v43, 2
    %v45 = vadd.s32 %v41, 2
    %v46 = vlaneseq
    %v47 = vshrl.u32 %v46, 7
    %v48 = vsub.s32 0, %v47
    %v49 = vrot.slane %v41, %v48
    %v50 = vlaneseq
    %v51 = vshrl.u32 %v50, 7
    %v52 = vsub.s32 1, %v51
    %v53 = vrot.slane %v45, %v52
    %v54 = vsel %vm44, %v49, %v53
    %vm55 = vcmp.eq.s32.totalorder %v43, %v54
    %v56 = vsel %vm55, 1, 0
    %v57 = vcvt.s32.f32 %v56
    %v58 = vld [vmem:[%s3] sm:$0xff]
    %v59 = vld [vmem:[%s3 + $0x8] sm:$0xff]
    %v60 = vld [vmem:[%s3 + $0x10] sm:$0xff]
    %v61 = vld [vmem:[%s3 + $0x18] sm:$0xff]
    %v62 = vld [vmem:[%s3 + $0x20] sm:$0xff]
    %v63 = vld [vmem:[%s3 + $0x28] sm:$0xff]
    %v64 = vld [vmem:[%s3 + $0x30] sm:$0xff]
    %v65 = vld [vmem:[%s3 + $0x38] sm:$0xff]
    %v66 = vld [vmem:[%s3 + $0x40] sm:$0xff]
    %v67 = vld [vmem:[%s3 + $0x48] sm:$0xff]
    %v68 = vld [vmem:[%s3 + $0x50] sm:$0xff]
    %v69 = vld [vmem:[%s3 + $0x58] sm:$0xff]
    %v70 = vld [vmem:[%s3 + $0x60] sm:$0xff]
    %v71 = vld [vmem:[%s3 + $0x68] sm:$0xff]
    %v72 = vld [vmem:[%s3 + $0x70] sm:$0xff]
    %v73 = vld [vmem:[%s3 + $0x78] sm:$0xff]
    %vm74 = vcmask 64512
    %v76 = vsel %vm74, %v58, 0
    %v79 = vsel %vm74, %v59, 0
    %v82 = vsel %vm74, %v60, 0
    %v85 = vsel %vm74, %v61, 0
    %v88 = vsel %vm74, %v62, 0
    %v91 = vsel %vm74, %v63, 0
    %v94 = vsel %vm74, %v64, 0
    %v97 = vsel %vm74, %v65, 0
    %v100 = vsel %vm74, %v66, 0
    %v103 = vsel %vm74, %v67, 0
    %v106 = vsel %vm74, %v68, 0
    %v109 = vsel %vm74, %v69, 0
    %v112 = vsel %vm74, %v70, 0
    %v115 = vsel %vm74, %v71, 0
    %v118 = vsel %vm74, %v72, 0
    %v121 = vsel %vm74, %v73, 0
    %123 = vmatprep.subr.mxu0 0.0
    %124 = vmatpush1.msra.mxu0 0.0
    %125 = vmatprep.subr.mxu0 0.0
    %126 = vmatpush1.msra.mxu0 0.0
    %127 = vmatprep.subr.mxu0 0.0
    %128 = vmatpush1.msra.mxu0 0.0
    %129 = vmatprep.subr.mxu0 0.0
    %130 = vmatpush1.msra.mxu0 0.0
    %131 = vmatprep.subr.mxu0 0.0
    %132 = vmatpush1.msra.mxu0 0.0
    %133 = vmatprep.subr.mxu0 0.0
    %134 = vmatpush1.msra.mxu0 0.0
    %135 = vmatprep.subr.mxu0 0.0
    %136 = vmatpush1.msra.mxu0 0.0
    %137 = vmatprep.subr.mxu0 0.0
    %138 = vmatpush1.msra.mxu0 0.0
    %139 = vmatprep.subr.mxu0 0.0
    %140 = vmatpush1.msra.mxu0 0.0
    %141 = vmatprep.subr.mxu0 0.0
    %142 = vmatpush1.msra.mxu0 0.0
    %143 = vmatprep.subr.mxu0 0.0
    %144 = vmatpush1.msra.mxu0 0.0
    %145 = vmatprep.subr.mxu0 0.0
    %146 = vmatpush1.msra.mxu0 0.0
    %147 = vmatprep.subr.mxu0 0.0
    %148 = vmatpush1.msra.mxu0 0.0
    %149 = vmatprep.subr.mxu0 0.0
    %150 = vmatpush1.msra.mxu0 0.0
    %151 = vmatprep.subr.mxu0 0.0
    %152 = vmatpush1.msra.mxu0 0.0
    %153 = vmatprep.subr.mxu0 0.0
    %154 = vmatpush1.msra.mxu0 %v57
    %155 = vmatprep.subr.mxu0 0.0
    %156 = vmatpush2.msra.mxu0 0.0
    %157 = vmatprep.subr.mxu0 0.0
    %158 = vmatpush2.msra.mxu0 0.0
    %159 = vmatprep.subr.mxu0 0.0
    %160 = vmatpush2.msra.mxu0 0.0
    %161 = vmatprep.subr.mxu0 0.0
    %162 = vmatpush2.msra.mxu0 0.0
    %163 = vmatprep.subr.mxu0 0.0
    %164 = vmatpush2.msra.mxu0 0.0
    %165 = vmatprep.subr.mxu0 0.0
    %166 = vmatpush2.msra.mxu0 0.0
    %167 = vmatprep.subr.mxu0 0.0
    %168 = vmatpush2.msra.mxu0 0.0
    %169 = vmatprep.subr.mxu0 0.0
    %170 = vmatpush2.msra.mxu0 0.0
    %171 = vmatprep.subr.mxu0 0.0
    %172 = vmatpush2.msra.mxu0 0.0
    %173 = vmatprep.subr.mxu0 0.0
    %174 = vmatpush2.msra.mxu0 0.0
    %175 = vmatprep.subr.mxu0 0.0
    %176 = vmatpush2.msra.mxu0 0.0
    %177 = vmatprep.subr.mxu0 0.0
    %178 = vmatpush2.msra.mxu0 0.0
    %179 = vmatprep.subr.mxu0 0.0
    %180 = vmatpush2.msra.mxu0 0.0
    %181 = vmatprep.subr.mxu0 0.0
    %182 = vmatpush2.msra.mxu0 0.0
    %183 = vmatprep.subr.mxu0 0.0
    %184 = vmatpush2.msra.mxu0 0.0
    %185 = vmatprep.subr.mxu0 0.0
    %186 = vmatpush2.msra.mxu0 0.0
    %187 = vmatprep.mubr.f32.mxu0 0.0
    %188 = vmatmul.mubr.f32.gmra.mxu0 %v76
    %v189 = vpop.f32.mrf.mxu0
    %v190 = vadd.f32 0.0, %v189
    %v191 = vpop.f32.mrf.mxu0
    %192 = vmatprep.mubr.f32.mxu0 0.0
    %193 = vmatmul.mubr.f32.gmra.mxu0 %v79
    %v194 = vpop.f32.mrf.mxu0
    %v195 = vadd.f32 0.0, %v194
    %v196 = vpop.f32.mrf.mxu0
    %197 = vmatprep.mubr.f32.mxu0 0.0
    %198 = vmatmul.mubr.f32.gmra.mxu0 %v82
    %v199 = vpop.f32.mrf.mxu0
    %v200 = vadd.f32 0.0, %v199
    %v201 = vpop.f32.mrf.mxu0
    %202 = vmatprep.mubr.f32.mxu0 0.0
    %203 = vmatmul.mubr.f32.gmra.mxu0 %v85
    %v204 = vpop.f32.mrf.mxu0
    %v205 = vadd.f32 0.0, %v204
    %v206 = vpop.f32.mrf.mxu0
    %207 = vmatprep.mubr.f32.mxu0 0.0
    %208 = vmatmul.mubr.f32.gmra.mxu0 %v88
    %v209 = vpop.f32.mrf.mxu0
    %v210 = vadd.f32 0.0, %v209
    %v211 = vpop.f32.mrf.mxu0
    %212 = vmatprep.mubr.f32.mxu0 0.0
    %213 = vmatmul.mubr.f32.gmra.mxu0 %v91
    %v214 = vpop.f32.mrf.mxu0
    %v215 = vadd.f32 0.0, %v214
    %v216 = vpop.f32.mrf.mxu0
    %217 = vmatprep.mubr.f32.mxu0 0.0
    %218 = vmatmul.mubr.f32.gmra.mxu0 %v94
    %v219 = vpop.f32.mrf.mxu0
    %v220 = vadd.f32 0.0, %v219
    %v221 = vpop.f32.mrf.mxu0
    %222 = vmatprep.mubr.f32.mxu0 0.0
    %223 = vmatmul.mubr.f32.gmra.mxu0 %v97
    %v224 = vpop.f32.mrf.mxu0
    %v225 = vadd.f32 0.0, %v224
    %v226 = vpop.f32.mrf.mxu0
    %227 = vmatprep.mubr.f32.mxu0 0.0
    %228 = vmatmul.mubr.f32.gmra.mxu0 %v100
    %v229 = vpop.f32.mrf.mxu0
    %v230 = vadd.f32 0.0, %v229
    %v231 = vpop.f32.mrf.mxu0
    %232 = vmatprep.mubr.f32.mxu0 0.0
    %233 = vmatmul.mubr.f32.gmra.mxu0 %v103
    %v234 = vpop.f32.mrf.mxu0
    %v235 = vadd.f32 0.0, %v234
    %v236 = vpop.f32.mrf.mxu0
    %237 = vmatprep.mubr.f32.mxu0 0.0
    %238 = vmatmul.mubr.f32.gmra.mxu0 %v106
    %v239 = vpop.f32.mrf.mxu0
    %v240 = vadd.f32 0.0, %v239
    %v241 = vpop.f32.mrf.mxu0
    %242 = vmatprep.mubr.f32.mxu0 0.0
    %243 = vmatmul.mubr.f32.gmra.mxu0 %v109
    %v244 = vpop.f32.mrf.mxu0
    %v245 = vadd.f32 0.0, %v244
    %v246 = vpop.f32.mrf.mxu0
    %247 = vmatprep.mubr.f32.mxu0 0.0
    %248 = vmatmul.mubr.f32.gmra.mxu0 %v112
    %v249 = vpop.f32.mrf.mxu0
    %v250 = vadd.f32 0.0, %v249
    %v251 = vpop.f32.mrf.mxu0
    %252 = vmatprep.mubr.f32.mxu0 0.0
    %253 = vmatmul.mubr.f32.gmra.mxu0 %v115
    %v254 = vpop.f32.mrf.mxu0
    %v255 = vadd.f32 0.0, %v254
    %v256 = vpop.f32.mrf.mxu0
    %257 = vmatprep.mubr.f32.mxu0 0.0
    %258 = vmatmul.mubr.f32.gmra.mxu0 %v118
    %v259 = vpop.f32.mrf.mxu0
    %v260 = vadd.f32 0.0, %v259
    %v261 = vpop.f32.mrf.mxu0
    %262 = vmatprep.mubr.f32.mxu0 0.0
    %263 = vmatmul.mubr.f32.gmra.mxu0 %v121
    %v264 = vpop.f32.mrf.mxu0
    %v265 = vadd.f32 0.0, %v264
    %v266 = vpop.f32.mrf.mxu0
    %267 = vdwg.mxu0
    %v269 = vsel %vm74, %v24, 0
    %v272 = vsel %vm74, %v25, 0
    %v275 = vsel %vm74, %v26, 0
    %v278 = vsel %vm74, %v27, 0
    %v281 = vsel %vm74, %v28, 0
    %v284 = vsel %vm74, %v29, 0
    %v287 = vsel %vm74, %v30, 0
    %v290 = vsel %vm74, %v31, 0
    %v293 = vsel %vm74, %v32, 0
    %v296 = vsel %vm74, %v33, 0
    %v299 = vsel %vm74, %v34, 0
    %v302 = vsel %vm74, %v35, 0
    %v305 = vsel %vm74, %v36, 0
    %v308 = vsel %vm74, %v37, 0
    %v311 = vsel %vm74, %v38, 0
    %v314 = vsel %vm74, %v39, 0
    %v317 = vsel %vm74, %v40, 0
    %319 = vmatprep.subr.mxu0 0.0
    %320 = vmatpush1.xpose.msra.mxu0 0.0
    %321 = vmatprep.subr.mxu0 0.0
    %322 = vmatpush1.xpose.msra.mxu0 0.0
    %323 = vmatprep.subr.mxu0 0.0
    %324 = vmatpush1.xpose.msra.mxu0 0.0
    %325 = vmatprep.subr.mxu0 0.0
    %326 = vmatpush1.xpose.msra.mxu0 0.0
    %327 = vmatprep.subr.mxu0 0.0
    %328 = vmatpush1.xpose.msra.mxu0 0.0
    %329 = vmatprep.subr.mxu0 0.0
    %330 = vmatpush1.xpose.msra.mxu0 0.0
    %331 = vmatprep.subr.mxu0 0.0
    %332 = vmatpush1.xpose.msra.mxu0 0.0
    %333 = vmatprep.subr.mxu0 0.0
    %334 = vmatpush1.xpose.msra.mxu0 0.0
    %335 = vmatprep.subr.mxu0 0.0
    %336 = vmatpush1.xpose.msra.mxu0 0.0
    %337 = vmatprep.subr.mxu0 0.0
    %338 = vmatpush1.xpose.msra.mxu0 0.0
    %339 = vmatprep.subr.mxu0 0.0
    %340 = vmatpush1.xpose.msra.mxu0 0.0
    %341 = vmatprep.subr.mxu0 0.0
    %342 = vmatpush1.xpose.msra.mxu0 0.0
    %343 = vmatprep.subr.mxu0 0.0
    %344 = vmatpush1.xpose.msra.mxu0 0.0
    %345 = vmatprep.subr.mxu0 0.0
    %346 = vmatpush1.xpose.msra.mxu0 0.0
    %347 = vmatprep.subr.mxu0 0.0
    %348 = vmatpush1.xpose.msra.mxu0 0.0
    %349 = vmatprep.subr.mxu0 0.0
    %350 = vmatpush1.xpose.msra.mxu0 %v317
    %351 = vmatprep.subr.mxu0 0.0
    %352 = vmatpush2.xpose.msra.mxu0 0.0
    %353 = vmatprep.subr.mxu0 0.0
    %354 = vmatpush2.xpose.msra.mxu0 0.0
    %355 = vmatprep.subr.mxu0 0.0
    %356 = vmatpush2.xpose.msra.mxu0 0.0
    %357 = vmatprep.subr.mxu0 0.0
    %358 = vmatpush2.xpose.msra.mxu0 0.0
    %359 = vmatprep.subr.mxu0 0.0
    %360 = vmatpush2.xpose.msra.mxu0 0.0
    %361 = vmatprep.subr.mxu0 0.0
    %362 = vmatpush2.xpose.msra.mxu0 0.0
    %363 = vmatprep.subr.mxu0 0.0
    %364 = vmatpush2.xpose.msra.mxu0 0.0
    %365 = vmatprep.subr.mxu0 0.0
    %366 = vmatpush2.xpose.msra.mxu0 0.0
    %367 = vmatprep.subr.mxu0 0.0
    %368 = vmatpush2.xpose.msra.mxu0 0.0
    %369 = vmatprep.subr.mxu0 0.0
    %370 = vmatpush2.xpose.msra.mxu0 0.0
    %371 = vmatprep.subr.mxu0 0.0
    %372 = vmatpush2.xpose.msra.mxu0 0.0
    %373 = vmatprep.subr.mxu0 0.0
    %374 = vmatpush2.xpose.msra.mxu0 0.0
    %375 = vmatprep.subr.mxu0 0.0
    %376 = vmatpush2.xpose.msra.mxu0 0.0
    %377 = vmatprep.subr.mxu0 0.0
    %378 = vmatpush2.xpose.msra.mxu0 0.0
    %379 = vmatprep.subr.mxu0 0.0
    %380 = vmatpush2.xpose.msra.mxu0 0.0
    %381 = vmatprep.subr.mxu0 0.0
    %382 = vmatpush2.xpose.msra.mxu0 0.0
    %383 = vmatprep.mubr.f32.mxu0 0.0
    %384 = vmatmul.mubr.f32.gmra.mxu0 %v269
    %v385 = vpop.f32.mrf.mxu0
    %v386 = vadd.f32 %v190, %v385
    %v387 = vpop.f32.mrf.mxu0
    %388 = vmatprep.mubr.f32.mxu0 0.0
    %389 = vmatmul.mubr.f32.gmra.mxu0 %v272
    %v390 = vpop.f32.mrf.mxu0
    %v391 = vadd.f32 %v195, %v390
    %v392 = vpop.f32.mrf.mxu0
    %393 = vmatprep.mubr.f32.mxu0 0.0
    %394 = vmatmul.mubr.f32.gmra.mxu0 %v275
    %v395 = vpop.f32.mrf.mxu0
    %v396 = vadd.f32 %v200, %v395
    %v397 = vpop.f32.mrf.mxu0
    %398 = vmatprep.mubr.f32.mxu0 0.0
    %399 = vmatmul.mubr.f32.gmra.mxu0 %v278
    %v400 = vpop.f32.mrf.mxu0
    %v401 = vadd.f32 %v205, %v400
    %v402 = vpop.f32.mrf.mxu0
    %403 = vmatprep.mubr.f32.mxu0 0.0
    %404 = vmatmul.mubr.f32.gmra.mxu0 %v281
    %v405 = vpop.f32.mrf.mxu0
    %v406 = vadd.f32 %v210, %v405
    %v407 = vpop.f32.mrf.mxu0
    %408 = vmatprep.mubr.f32.mxu0 0.0
    %409 = vmatmul.mubr.f32.gmra.mxu0 %v284
    %v410 = vpop.f32.mrf.mxu0
    %v411 = vadd.f32 %v215, %v410
    %v412 = vpop.f32.mrf.mxu0
    %413 = vmatprep.mubr.f32.mxu0 0.0
    %414 = vmatmul.mubr.f32.gmra.mxu0 %v287
    %v415 = vpop.f32.mrf.mxu0
    %v416 = vadd.f32 %v220, %v415
    %v417 = vpop.f32.mrf.mxu0
    %418 = vmatprep.mubr.f32.mxu0 0.0
    %419 = vmatmul.mubr.f32.gmra.mxu0 %v290
    %v420 = vpop.f32.mrf.mxu0
    %v421 = vadd.f32 %v225, %v420
    %v422 = vpop.f32.mrf.mxu0
    %423 = vmatprep.mubr.f32.mxu0 0.0
    %424 = vmatmul.mubr.f32.gmra.mxu0 %v293
    %v425 = vpop.f32.mrf.mxu0
    %v426 = vadd.f32 %v230, %v425
    %v427 = vpop.f32.mrf.mxu0
    %428 = vmatprep.mubr.f32.mxu0 0.0
    %429 = vmatmul.mubr.f32.gmra.mxu0 %v296
    %v430 = vpop.f32.mrf.mxu0
    %v431 = vadd.f32 %v235, %v430
    %v432 = vpop.f32.mrf.mxu0
    %433 = vmatprep.mubr.f32.mxu0 0.0
    %434 = vmatmul.mubr.f32.gmra.mxu0 %v299
    %v435 = vpop.f32.mrf.mxu0
    %v436 = vadd.f32 %v240, %v435
    %v437 = vpop.f32.mrf.mxu0
    %438 = vmatprep.mubr.f32.mxu0 0.0
    %439 = vmatmul.mubr.f32.gmra.mxu0 %v302
    %v440 = vpop.f32.mrf.mxu0
    %v441 = vadd.f32 %v245, %v440
    %v442 = vpop.f32.mrf.mxu0
    %443 = vmatprep.mubr.f32.mxu0 0.0
    %444 = vmatmul.mubr.f32.gmra.mxu0 %v305
    %v445 = vpop.f32.mrf.mxu0
    %v446 = vadd.f32 %v250, %v445
    %v447 = vpop.f32.mrf.mxu0
    %448 = vmatprep.mubr.f32.mxu0 0.0
    %449 = vmatmul.mubr.f32.gmra.mxu0 %v308
    %v450 = vpop.f32.mrf.mxu0
    %v451 = vadd.f32 %v255, %v450
    %v452 = vpop.f32.mrf.mxu0
    %453 = vmatprep.mubr.f32.mxu0 0.0
    %454 = vmatmul.mubr.f32.gmra.mxu0 %v311
    %v455 = vpop.f32.mrf.mxu0
    %v456 = vadd.f32 %v260, %v455
    %v457 = vpop.f32.mrf.mxu0
    %458 = vmatprep.mubr.f32.mxu0 0.0
    %459 = vmatmul.mubr.f32.gmra.mxu0 %v314
    %v460 = vpop.f32.mrf.mxu0
    %v461 = vadd.f32 %v265, %v460
    %v462 = vpop.f32.mrf.mxu0
    %463 = vdwg.mxu0
    %v464 = vmax.f32 %v386, 0.0
    %v465 = vmax.f32 %v391, 0.0
    %v466 = vmax.f32 %v396, 0.0
    %v467 = vmax.f32 %v401, 0.0
    %v468 = vmax.f32 %v406, 0.0
    %v469 = vmax.f32 %v411, 0.0
    %v470 = vmax.f32 %v416, 0.0
    %v471 = vmax.f32 %v421, 0.0
    %v472 = vmax.f32 %v426, 0.0
    %v473 = vmax.f32 %v431, 0.0
    %v474 = vmax.f32 %v436, 0.0
    %v475 = vmax.f32 %v441, 0.0
    %v476 = vmax.f32 %v446, 0.0
    %v477 = vmax.f32 %v451, 0.0
    %v478 = vmax.f32 %v456, 0.0
    %v479 = vmax.f32 %v461, 0.0
    %v480 = vld [vmem:[%s4] sm:$0xff]
    %v481 = vld [vmem:[%s4 + $0x8] sm:$0xff]
    %v482 = vld [vmem:[%s4 + $0x10] sm:$0xff]
    %v483 = vld [vmem:[%s4 + $0x18] sm:$0xff]
    %v484 = vld [vmem:[%s4 + $0x20] sm:$0xff]
    %v485 = vld [vmem:[%s4 + $0x28] sm:$0xff]
    %v486 = vld [vmem:[%s4 + $0x30] sm:$0xff]
    %v487 = vld [vmem:[%s4 + $0x38] sm:$0xff]
    %488 = vmatprep.subr.mxu0 0.0
    %489 = vmatpush1.msra.mxu0 %v479
    %490 = vmatprep.subr.mxu0 0.0
    %491 = vmatpush1.msra.mxu0 %v478
    %492 = vmatprep.subr.mxu0 0.0
    %493 = vmatpush1.msra.mxu0 %v477
    %494 = vmatprep.subr.mxu0 0.0
    %495 = vmatpush1.msra.mxu0 %v476
    %496 = vmatprep.subr.mxu0 0.0
    %497 = vmatpush1.msra.mxu0 %v475
    %498 = vmatprep.subr.mxu0 0.0
    %499 = vmatpush1.msra.mxu0 %v474
    %500 = vmatprep.subr.mxu0 0.0
    %501 = vmatpush1.msra.mxu0 %v473
    %502 = vmatprep.subr.mxu0 0.0
    %503 = vmatpush1.msra.mxu0 %v472
    %504 = vmatprep.subr.mxu0 0.0
    %505 = vmatpush1.msra.mxu0 %v471
    %506 = vmatprep.subr.mxu0 0.0
    %507 = vmatpush1.msra.mxu0 %v470
    %508 = vmatprep.subr.mxu0 0.0
    %509 = vmatpush1.msra.mxu0 %v469
    %510 = vmatprep.subr.mxu0 0.0
    %511 = vmatpush1.msra.mxu0 %v468
    %512 = vmatprep.subr.mxu0 0.0
    %513 = vmatpush1.msra.mxu0 %v467
    %514 = vmatprep.subr.mxu0 0.0
    %515 = vmatpush1.msra.mxu0 %v466
    %516 = vmatprep.subr.mxu0 0.0
    %517 = vmatpush1.msra.mxu0 %v465
    %518 = vmatprep.subr.mxu0 0.0
    %519 = vmatpush1.msra.mxu0 %v464
    %520 = vmatprep.subr.mxu0 0.0
    %521 = vmatpush2.msra.mxu0 0.0
    %522 = vmatprep.subr.mxu0 0.0
    %523 = vmatpush2.msra.mxu0 0.0
    %524 = vmatprep.subr.mxu0 0.0
    %525 = vmatpush2.msra.mxu0 0.0
    %526 = vmatprep.subr.mxu0 0.0
    %527 = vmatpush2.msra.mxu0 0.0
    %528 = vmatprep.subr.mxu0 0.0
    %529 = vmatpush2.msra.mxu0 0.0
    %530 = vmatprep.subr.mxu0 0.0
    %531 = vmatpush2.msra.mxu0 0.0
    %532 = vmatprep.subr.mxu0 0.0
    %533 = vmatpush2.msra.mxu0 0.0
    %534 = vmatprep.subr.mxu0 0.0
    %535 = vmatpush2.msra.mxu0 0.0
    %536 = vmatprep.subr.mxu0 0.0
    %537 = vmatpush2.msra.mxu0 0.0
    %538 = vmatprep.subr.mxu0 0.0
    %539 = vmatpush2.msra.mxu0 0.0
    %540 = vmatprep.subr.mxu0 0.0
    %541 = vmatpush2.msra.mxu0 0.0
    %542 = vmatprep.subr.mxu0 0.0
    %543 = vmatpush2.msra.mxu0 0.0
    %544 = vmatprep.subr.mxu0 0.0
    %545 = vmatpush2.msra.mxu0 0.0
    %546 = vmatprep.subr.mxu0 0.0
    %547 = vmatpush2.msra.mxu0 0.0
    %548 = vmatprep.subr.mxu0 0.0
    %549 = vmatpush2.msra.mxu0 0.0
    %550 = vmatprep.subr.mxu0 0.0
    %551 = vmatpush2.msra.mxu0 0.0
    %552 = vmatprep.mubr.f32.mxu0 0.0
    %553 = vmatmul.mubr.f32.gmra.mxu0 %v480
    %v554 = vpop.f32.mrf.mxu0
    %v555 = vadd.f32 0.0, %v554
    %v556 = vpop.f32.mrf.mxu0
    %557 = vmatprep.mubr.f32.mxu0 0.0
    %558 = vmatmul.mubr.f32.gmra.mxu0 %v481
    %v559 = vpop.f32.mrf.mxu0
    %v560 = vadd.f32 0.0, %v559
    %v561 = vpop.f32.mrf.mxu0
    %562 = vmatprep.mubr.f32.mxu0 0.0
    %563 = vmatmul.mubr.f32.gmra.mxu0 %v482
    %v564 = vpop.f32.mrf.mxu0
    %v565 = vadd.f32 0.0, %v564
    %v566 = vpop.f32.mrf.mxu0
    %567 = vmatprep.mubr.f32.mxu0 0.0
    %568 = vmatmul.mubr.f32.gmra.mxu0 %v483
    %v569 = vpop.f32.mrf.mxu0
    %v570 = vadd.f32 0.0, %v569
    %v571 = vpop.f32.mrf.mxu0
    %572 = vmatprep.mubr.f32.mxu0 0.0
    %573 = vmatmul.mubr.f32.gmra.mxu0 %v484
    %v574 = vpop.f32.mrf.mxu0
    %v575 = vadd.f32 0.0, %v574
    %v576 = vpop.f32.mrf.mxu0
    %577 = vmatprep.mubr.f32.mxu0 0.0
    %578 = vmatmul.mubr.f32.gmra.mxu0 %v485
    %v579 = vpop.f32.mrf.mxu0
    %v580 = vadd.f32 0.0, %v579
    %v581 = vpop.f32.mrf.mxu0
    %582 = vmatprep.mubr.f32.mxu0 0.0
    %583 = vmatmul.mubr.f32.gmra.mxu0 %v486
    %v584 = vpop.f32.mrf.mxu0
    %v585 = vadd.f32 0.0, %v584
    %v586 = vpop.f32.mrf.mxu0
    %587 = vmatprep.mubr.f32.mxu0 0.0
    %588 = vmatmul.mubr.f32.gmra.mxu0 %v487
    %v589 = vpop.f32.mrf.mxu0
    %v590 = vadd.f32 0.0, %v589
    %v591 = vpop.f32.mrf.mxu0
    %592 = vdwg.mxu0
    %v593 = vmax.f32 %v555, 0.0
    %v594 = vmax.f32 %v560, 0.0
    %v595 = vmax.f32 %v565, 0.0
    %v596 = vmax.f32 %v570, 0.0
    %v597 = vmax.f32 %v575, 0.0
    %v598 = vmax.f32 %v580, 0.0
    %v599 = vmax.f32 %v585, 0.0
    %v600 = vmax.f32 %v590, 0.0
    %v601 = vld [vmem:[%s5] sm:$0xff]
    %v602 = vld [vmem:[%s5 + $0x8] sm:$0xff]
    %v603 = vld [vmem:[%s5 + $0x10] sm:$0xff]
    %v604 = vld [vmem:[%s5 + $0x18] sm:$0xff]
    %v605 = vld [vmem:[%s5 + $0x20] sm:$0xff]
    %v606 = vld [vmem:[%s5 + $0x28] sm:$0xff]
    %v607 = vld [vmem:[%s5 + $0x30] sm:$0xff]
    %v608 = vld [vmem:[%s5 + $0x38] sm:$0xff]
    %610 = vset.pattern.permute.xlu0 0
    %611 = vperm.xlu0 %610, %v601
    %v612 = vpop.permute.xlu0 %611
    %615 = vset.pattern.permute.xlu0 0
    %616 = vperm.xlu0 %615, %v602
    %v617 = vpop.permute.xlu0 %616
    %620 = vset.pattern.permute.xlu0 0
    %621 = vperm.xlu0 %620, %v603
    %v622 = vpop.permute.xlu0 %621
    %625 = vset.pattern.permute.xlu0 0
    %626 = vperm.xlu0 %625, %v604
    %v627 = vpop.permute.xlu0 %626
    %630 = vset.pattern.permute.xlu0 0
    %631 = vperm.xlu0 %630, %v605
    %v632 = vpop.permute.xlu0 %631
    %635 = vset.pattern.permute.xlu0 0
    %636 = vperm.xlu0 %635, %v606
    %v637 = vpop.permute.xlu0 %636
    %640 = vset.pattern.permute.xlu0 0
    %641 = vperm.xlu0 %640, %v607
    %v642 = vpop.permute.xlu0 %641
    %645 = vset.pattern.permute.xlu0 0
    %646 = vperm.xlu0 %645, %v608
    %v647 = vpop.permute.xlu0 %646
    %v649 = vmul.f32 %v593, %v612
    %v650 = vmul.f32 %v594, %v617
    %v651 = vmul.f32 %v595, %v622
    %v652 = vmul.f32 %v596, %v627
    %v653 = vmul.f32 %v597, %v632
    %v654 = vmul.f32 %v598, %v637
    %v655 = vmul.f32 %v599, %v642
    %v656 = vmul.f32 %v600, %v647
    %v657 = vsel %vm74, %v649, 0.0
    %v658 = vsel %vm74, %v650, 0.0
    %v659 = vadd.f32 %v657, %v658
    %v660 = vsel %vm74, %v651, 0.0
    %v661 = vadd.f32 %v659, %v660
    %v662 = vsel %vm74, %v652, 0.0
    %v663 = vadd.f32 %v661, %v662
    %v664 = vsel %vm74, %v653, 0.0
    %v665 = vadd.f32 %v663, %v664
    %v666 = vsel %vm74, %v654, 0.0
    %v667 = vadd.f32 %v665, %v666
    %v668 = vsel %vm74, %v655, 0.0
    %v669 = vadd.f32 %v667, %v668
    %v670 = vsel %vm74, %v656, 0.0
    %v671 = vadd.f32 %v669, %v670
    %v672 = vrot.slane %v671, 4
    %v673 = vadd.f32 %v671, %v672
    %v674 = vrot.slane %v673, 2
    %v675 = vadd.f32 %v673, %v674
    %v676 = vrot.slane %v675, 1
    %v677 = vadd.f32 %v675, %v676
    %v678 = vmul.f32 %v677, 0.5
    %v679 = vtanh.pop %v678
    %v680 = vadd.f32 %v679, 1.0
    %v681 = vmul.f32 %v680, 0.5
    %vm682 = vcmask 57344
    %683 = vst.msk [vmem:[#allocation2] sm:$0x1] %vm682, %v681
    // Predicated region
    $region26: #{tpu_custom_call.1} parent=1 // pred_check
      _
    $region27: #{tpu_custom_call.1} parent=1 // pred_check_branch
      %685 = sbr.rel (0) target = $region29
    $region28: #{tpu_custom_call.1} parent=1 // pred_region
      %s687 = ssub.s32 16, 16
      %688 = vsyncadd [#allocation3], %s687
      %s690 = sshll.u32 [#allocation2], 4
      %s691 = int_to_ptr.vmem [resolvable:$true] %s690
      %693 = dma.vmem_to_hbm [thread:$0]  %s691, 16, %s6, [#allocation3]
    $region29: #{tpu_custom_call.1} parent=1 // pred_fallthru
      _
    // Predicated region
    $region30: #{tpu_custom_call.1} parent=1 // pred_check
      _
    $region31: #{tpu_custom_call.1} parent=1 // pred_check_branch
      %695 = sbr.rel (0) target = $region33
    $region32: #{tpu_custom_call.1} parent=1 // pred_region
      %696 = dma.done [#allocation3], 16
    $region33: #{tpu_custom_call.1} parent=1 // pred_fallthru
      _
    %697 = vsyncpa [#allocation3], 1

</llo_original>
